<compile_context>
chip_gen: v6e
topology: v6e:2x2x1
jax: 0.10.0
libtpu: 0.0.40
codegen_flags: <defaults>
</compile_context>

<pallas_src>
import functools

import jax
import jax.numpy as jnp
from jax.experimental import pallas as pl
from jax.experimental.pallas import tpu as pltpu

_LANE = 128


def _ceil_to(v, m):
    return ((v + m - 1) // m) * m


def _cdiv(a, b):
    return -(-a // b)


def _pick_tile_m(n):
    """Batch tile (lane dim): multiple of 128, large tiles, >=2 grid steps for
    mid/large batches (v7x megacore), batch-padding waste capped (~12.5%)."""
    if n <= 512:
        return _ceil_to(n, _LANE)                       # single grid step
    if n <= 1024:
        return _ceil_to(_cdiv(n, 2), _LANE)             # >=2 "parallel" steps (v7x)
    for t in (4096, 2048, 1024, 512, 256, _LANE):
        steps = _cdiv(n, t)
        if steps >= 2 and steps * t - n <= max(n // 8, _LANE - 1):
            return t
    return 512


def _make_mlp_kernel(n_hidden: int, din: int, out_dim: int):
    """Kernel body; features live on sublanes, batch rows on lanes (lane-dense)."""

    def _sigmoid(x):
        # Single EUP tanh push per vreg; avoids an exp + VPU-divide lowering.
        return 0.5 * jnp.tanh(0.5 * x) + 0.5

    def kernel(in_ref, *refs):
        # refs layout: w_in, b_in, (w_h0, b_h0), ..., (w_h{n-1}, b_h{n-1}), w_out, o_ref
        o_ref = refs[-1]
        w_in = refs[0][...]                     # (h0, din)
        b_in = refs[1][...]                     # (h0, 1)
        inp = in_ref[...]                       # (din, tile_m)

        # ---- first layer: din is tiny (x/z columns) -> VPU broadcast-FMA
        # instead of a degenerate K=din MXU matmul.
        acc = b_in                               # broadcasts up to (h0, tile_m)
        for k in range(din):
            acc = acc + w_in[:, k:k + 1] * inp[k:k + 1, :]
        h = _sigmoid(acc)                        # (h0, tile_m)

        # ---- hidden layers on the MXU; batch stays lane-dense, features on
        # sublanes need no 128-padding in this orientation.
        for i in range(n_hidden):
            w = refs[2 + 2 * i][...]             # (h_{i+1}, h_i)
            b = refs[3 + 2 * i][...]             # (h_{i+1}, 1)
            h = _sigmoid(jnp.dot(w, h, preferred_element_type=jnp.float32) + b)

        # ---- output layer (no bias).  out_dim is tiny -> VPU multiply + XLU
        # sublane reduce per output column; the result is already lane-packed
        # so the store is an unmasked lane-dense vst of (out_dim, tile_m).
        w_out = refs[2 + 2 * n_hidden][...]      # (h_last, out_dim)
        cols = [jnp.sum(h * w_out[:, j:j + 1], axis=0, keepdims=True)
                for j in range(out_dim)]
        o_ref[...] = cols[0] if out_dim == 1 else jnp.concatenate(cols, axis=0)

    return kernel


@functools.partial(jax.jit, static_argnames=("tile_m",))
def dcsnn_forward(x, z, params, *, tile_m=None):
    """Pallas implementation of DCSNNModel.forward.

    x: (N, dx), z: (N, dz)  ->  output: (N, out_dim)
    params: dict with
        'w_in' (in_dim, h0), 'b_in' (1, h0),
        'w_h'  list of (h_i, h_{i+1}), 'b_h' list of (1, h_{i+1}),
        'w_out' (h_last, out_dim)
    """
    x = x.astype(jnp.float32)
    z = z.astype(jnp.float32)
    n, dx = x.shape
    _, dz = z.shape
    din = dx + dz
    out_dim = params["w_out"].shape[1]
    n_hidden = len(params["w_h"])

    if tile_m is None:
        tile_m = _pick_tile_m(n)
    else:
        tile_m = _ceil_to(tile_m, _LANE)
    n_pad = _ceil_to(n, tile_m)

    # Host-side hstack + transpose: one lane-dense (din, n_pad) input stream
    # (costs ~8 B/row on the host side, removes a lane-sparse DMA per step).
    inp = jnp.concatenate((x, z), axis=1).T            # (din, n)
    if n_pad != n:
        inp = jnp.pad(inp, ((0, 0), (0, n_pad - n)))

    # Weights in "features on sublanes" layout; all f32 (see bf16 TODO above).
    f32 = lambda a: a.astype(jnp.float32)
    weight_args = [f32(params["w_in"]).T,              # (h0, din)
                   f32(params["b_in"]).T]              # (h0, 1)
    for w, b in zip(params["w_h"], params["b_h"]):
        weight_args += [f32(w).T, f32(b).T]            # (h_{i+1}, h_i), (h_{i+1}, 1)
    weight_args.append(f32(params["w_out"]))           # (h_last, out_dim)

    # Resident weights: block == full array, same block every grid step.
    def _resident(a):
        nd = a.ndim
        return pl.BlockSpec(a.shape, lambda i, _nd=nd: (0,) * _nd)

    in_specs = [pl.BlockSpec((din, tile_m), lambda i: (0, i))]
    in_specs += [_resident(a) for a in weight_args]

    out = pl.pallas_call(
        _make_mlp_kernel(n_hidden, din, out_dim),
        out_shape=jax.ShapeDtypeStruct((out_dim, n_pad), jnp.float32),
        grid_spec=pltpu.PrefetchScalarGridSpec(
            num_scalar_prefetch=0,
            grid=(n_pad // tile_m,),
            in_specs=in_specs,
            out_specs=pl.BlockSpec((out_dim, tile_m), lambda i: (0, i)),
        ),
        compiler_params=pltpu.CompilerParams(
            dimension_semantics=("parallel",),
        ),
    )(inp, *weight_args)

    # (out_dim, n_pad) -> (n, out_dim); tiny (4*out_dim B/row) host-side fixup.
    return out.T[:n]


def init_params(key, in_dim, hidden_dim, out_dim):
    """Deterministic parameter init mimicking nn.Linear's U(-1/sqrt(fan_in), 1/sqrt(fan_in))."""
    params = {"w_h": [], "b_h": []}
    k = key

    def linear(k, fan_in, fan_out, bias=True):
        k, kw, kb = jax.random.split(k, 3)
        bound = 1.0 / jnp.sqrt(fan_in)
        w = jax.random.uniform(kw, (fan_in, fan_out), jnp.float32, -bound, bound)
        b = (jax.random.uniform(kb, (1, fan_out), jnp.float32, -bound, bound)
             if bias else None)
        return k, w, b

    k, params["w_in"], params["b_in"] = linear(k, in_dim, hidden_dim[0])
    for i in range(len(hidden_dim) - 1):
        k, w, b = linear(k, hidden_dim[i], hidden_dim[i + 1])
        params["w_h"].append(w)
        params["b_h"].append(b)
    k, w_out, _ = linear(k, hidden_dim[-1], out_dim, bias=False)
    params["w_out"] = w_out
    return params


def reference_forward(x, z, params):
    """Plain-JAX reference (f32, high-precision matmuls) for correctness checking."""
    hp = jax.lax.Precision.HIGHEST
    h = jnp.concatenate((x, z), axis=1)
    h = jax.nn.sigmoid(jnp.dot(h, params["w_in"], precision=hp) + params["b_in"])
    for w, b in zip(params["w_h"], params["b_h"]):
        h = jax.nn.sigmoid(jnp.dot(h, w, precision=hp) + b)
    return jnp.dot(h, params["w_out"], precision=hp)


if __name__ == "__main__":
    key = jax.random.PRNGKey(0)
    k_x, k_z, k_p = jax.random.split(key, 3)

    # Small shapes consistent with the module: x,z are column inputs hstacked
    # into the network input (function-approximation setting).
    batch = 256
    x = jax.random.uniform(k_x, (batch, 1), jnp.float32, -1.0, 1.0)
    z = jax.random.uniform(k_z, (batch, 1), jnp.float32, -1.0, 1.0)

    in_dim = 2             # x_dim + z_dim after hstack
    hidden_dim = [32, 32]  # two hidden widths -> one hidden ModuleList layer
    out_dim = 1

    params = init_params(k_p, in_dim, hidden_dim, out_dim)

    out = jax.block_until_ready(dcsnn_forward(x, z, params))
    ref = reference_forward(x, z, params)

    assert out.shape == (batch, out_dim)
    # The kernel is f32 end-to-end (first/last layers are exact VPU/XLU math)
    # and typically agrees with the high-precision reference to ~1e-6; the
    # tolerance also covers backends where default-precision MXU dots round
    # f32 inputs to bf16 for the 32x32 hidden matmuls.
    assert jnp.allclose(out, ref, atol=5e-3, rtol=5e-3), \
        float(jnp.max(jnp.abs(out - ref)))

    print("KERNEL_OK")
</pallas_src>

<mosaic_0001>
module attributes {stable_mosaic.version = 11 : i64} {
  func.func @kernel(%arg0: i32, %arg1: memref<2x256xf32, #tpu.memory_space<vmem>>, %arg2: memref<32x2xf32, #tpu.memory_space<vmem>>, %arg3: memref<32x1xf32, #tpu.memory_space<vmem>>, %arg4: memref<32x32xf32, #tpu.memory_space<vmem>>, %arg5: memref<32x1xf32, #tpu.memory_space<vmem>>, %arg6: memref<32x1xf32, #tpu.memory_space<vmem>>, %arg7: memref<1x256xf32, #tpu.memory_space<vmem>>) attributes {dimension_semantics = [#tpu.dimension_semantics<parallel>], iteration_bounds = array<i64: 1>, scalar_prefetch = 0 : i64, scratch_operands = 0 : i64, tpu.core_type = #tpu.core_type<tc>, window_params = [{transform_indices = @transform_0, window_bounds = array<i64: 2, 256>}, {pipeline_mode = #tpu.pipeline_mode<synchronous>, transform_indices = @transform_1, window_bounds = array<i64: 32, 2>}, {pipeline_mode = #tpu.pipeline_mode<synchronous>, transform_indices = @transform_2, window_bounds = array<i64: 32, 1>}, {pipeline_mode = #tpu.pipeline_mode<synchronous>, transform_indices = @transform_3, window_bounds = array<i64: 32, 32>}, {pipeline_mode = #tpu.pipeline_mode<synchronous>, transform_indices = @transform_4, window_bounds = array<i64: 32, 1>}, {pipeline_mode = #tpu.pipeline_mode<synchronous>, transform_indices = @transform_5, window_bounds = array<i64: 32, 1>}, {transform_indices = @transform_6, window_bounds = array<i64: 1, 256>}]} {
    %c0 = arith.constant 0 : index
    %c0_0 = arith.constant 0 : index
    %0 = vector.load %arg2[%c0, %c0_0] : memref<32x2xf32, #tpu.memory_space<vmem>>, vector<32x2xf32>
    %c0_1 = arith.constant 0 : index
    %c0_2 = arith.constant 0 : index
    %1 = vector.load %arg3[%c0_1, %c0_2] : memref<32x1xf32, #tpu.memory_space<vmem>>, vector<32x1xf32>
    %c0_3 = arith.constant 0 : index
    %c0_4 = arith.constant 0 : index
    %2 = vector.load %arg1[%c0_3, %c0_4] : memref<2x256xf32, #tpu.memory_space<vmem>>, vector<2x256xf32>
    %3 = vector.extract_strided_slice %0 {offsets = [0, 0], sizes = [32, 1], strides = [1, 1]} : vector<32x2xf32> to vector<32x1xf32>
    %4 = vector.extract_strided_slice %2 {offsets = [0, 0], sizes = [1, 256], strides = [1, 1]} : vector<2x256xf32> to vector<1x256xf32>
    %5 = vector.broadcast %3 : vector<32x1xf32> to vector<32x256xf32>
    %6 = vector.broadcast %4 : vector<1x256xf32> to vector<32x256xf32>
    %7 = arith.mulf %5, %6 : vector<32x256xf32>
    %8 = vector.broadcast %1 : vector<32x1xf32> to vector<32x256xf32>
    %9 = arith.addf %8, %7 : vector<32x256xf32>
    %10 = vector.extract_strided_slice %0 {offsets = [0, 1], sizes = [32, 1], strides = [1, 1]} : vector<32x2xf32> to vector<32x1xf32>
    %11 = vector.extract_strided_slice %2 {offsets = [1, 0], sizes = [1, 256], strides = [1, 1]} : vector<2x256xf32> to vector<1x256xf32>
    %12 = vector.broadcast %10 : vector<32x1xf32> to vector<32x256xf32>
    %13 = vector.broadcast %11 : vector<1x256xf32> to vector<32x256xf32>
    %14 = arith.mulf %12, %13 : vector<32x256xf32>
    %15 = arith.addf %9, %14 : vector<32x256xf32>
    %cst = arith.constant 5.000000e-01 : f32
    %16 = vector.broadcast %cst : f32 to vector<32x256xf32>
    %17 = arith.mulf %16, %15 : vector<32x256xf32>
    %18 = math.tanh %17 : vector<32x256xf32>
    %cst_5 = arith.constant 5.000000e-01 : f32
    %19 = vector.broadcast %cst_5 : f32 to vector<32x256xf32>
    %20 = arith.mulf %19, %18 : vector<32x256xf32>
    %cst_6 = arith.constant 5.000000e-01 : f32
    %21 = vector.broadcast %cst_6 : f32 to vector<32x256xf32>
    %22 = arith.addf %20, %21 : vector<32x256xf32>
    %c0_7 = arith.constant 0 : index
    %c0_8 = arith.constant 0 : index
    %23 = vector.load %arg4[%c0_7, %c0_8] : memref<32x32xf32, #tpu.memory_space<vmem>>, vector<32x32xf32>
    %c0_9 = arith.constant 0 : index
    %c0_10 = arith.constant 0 : index
    %24 = vector.load %arg5[%c0_9, %c0_10] : memref<32x1xf32, #tpu.memory_space<vmem>>, vector<32x1xf32>
    %cst_11 = arith.constant dense<0.000000e+00> : vector<32x256xf32>
    %25 = tpu.matmul %23, %22, %cst_11 {dimension_numbers = #tpu.dot_dimension_numbers<[1], [0], [0], [1], [0, 0, 1, 1], [], []>} : vector<32x32xf32>, vector<32x256xf32>, vector<32x256xf32> -> vector<32x256xf32>
    %26 = vector.broadcast %24 : vector<32x1xf32> to vector<32x256xf32>
    %27 = arith.addf %25, %26 : vector<32x256xf32>
    %cst_12 = arith.constant 5.000000e-01 : f32
    %28 = vector.broadcast %cst_12 : f32 to vector<32x256xf32>
    %29 = arith.mulf %28, %27 : vector<32x256xf32>
    %30 = math.tanh %29 : vector<32x256xf32>
    %cst_13 = arith.constant 5.000000e-01 : f32
    %31 = vector.broadcast %cst_13 : f32 to vector<32x256xf32>
    %32 = arith.mulf %31, %30 : vector<32x256xf32>
    %cst_14 = arith.constant 5.000000e-01 : f32
    %33 = vector.broadcast %cst_14 : f32 to vector<32x256xf32>
    %34 = arith.addf %32, %33 : vector<32x256xf32>
    %c0_15 = arith.constant 0 : index
    %c0_16 = arith.constant 0 : index
    %35 = vector.load %arg6[%c0_15, %c0_16] : memref<32x1xf32, #tpu.memory_space<vmem>>, vector<32x1xf32>
    %36 = vector.broadcast %35 : vector<32x1xf32> to vector<32x256xf32>
    %37 = arith.mulf %34, %36 : vector<32x256xf32>
    %cst_17 = arith.constant dense<0.000000e+00> : vector<256xf32>
    %38 = vector.multi_reduction <add>, %37, %cst_17 [0] : vector<32x256xf32> to vector<256xf32>
    %39 = vector.shape_cast %38 : vector<256xf32> to vector<1x256xf32>
    %c0_18 = arith.constant 0 : index
    %c0_19 = arith.constant 0 : index
    %40 = vector.load %arg7[%c0_18, %c0_19] : memref<1x256xf32, #tpu.memory_space<vmem>>, vector<1x256xf32>
    tpu.vector_store %arg7[%c0_18, %c0_19], %39 {strides = array<i32>} : memref<1x256xf32, #tpu.memory_space<vmem>>, vector<1x256xf32>,
    return
  }
  func.func @transform_0(%arg0: i32) -> (i32, i32) {
    %c0_i32 = arith.constant 0 : i32
    %c0_i32_0 = arith.constant 0 : i32
    return %c0_i32, %arg0 : i32, i32
  }
  func.func @transform_1(%arg0: i32) -> (i32, i32) {
    %c0_i32 = arith.constant 0 : i32
    %c0_i32_0 = arith.constant 0 : i32
    %c0_i32_1 = arith.constant 0 : i32
    return %c0_i32, %c0_i32_0 : i32, i32
  }
  func.func @transform_2(%arg0: i32) -> (i32, i32) {
    %c0_i32 = arith.constant 0 : i32
    %c0_i32_0 = arith.constant 0 : i32
    %c0_i32_1 = arith.constant 0 : i32
    return %c0_i32, %c0_i32_0 : i32, i32
  }
  func.func @transform_3(%arg0: i32) -> (i32, i32) {
    %c0_i32 = arith.constant 0 : i32
    %c0_i32_0 = arith.constant 0 : i32
    %c0_i32_1 = arith.constant 0 : i32
    return %c0_i32, %c0_i32_0 : i32, i32
  }
  func.func @transform_4(%arg0: i32) -> (i32, i32) {
    %c0_i32 = arith.constant 0 : i32
    %c0_i32_0 = arith.constant 0 : i32
    %c0_i32_1 = arith.constant 0 : i32
    return %c0_i32, %c0_i32_0 : i32, i32
  }
  func.func @transform_5(%arg0: i32) -> (i32, i32) {
    %c0_i32 = arith.constant 0 : i32
    %c0_i32_0 = arith.constant 0 : i32
    %c0_i32_1 = arith.constant 0 : i32
    return %c0_i32, %c0_i32_0 : i32, i32
  }
  func.func @transform_6(%arg0: i32) -> (i32, i32) {
    %c0_i32 = arith.constant 0 : i32
    %c0_i32_0 = arith.constant 0 : i32
    return %c0_i32, %arg0 : i32, i32
  }
}

</mosaic_0001>

<llo_original>
// kernel: dcsnn_forward.1
$region0: #{dcsnn_forward.1}
  #allocation0 [shape = 'u32[]', space=smem, size = 0x4, offset = 0x4, fixed_abs, tag = 'smem constant byte address 0x4 - core index']
  #allocation1 [shape = 'u32[144,128]{1,0:T(1,128)}', space=vmem, size = 0x12000, scoped, tag = 'internal scratch']
  %s0 = inlined_call_operand.vmem [shape: f32[2,256], index: 0, kind: input, shape index: {}]
  %s1 = inlined_call_operand.vmem [shape: f32[32,2], index: 1, kind: input, shape index: {}]
  %s2 = inlined_call_operand.vmem [shape: f32[32,1], index: 2, kind: input, shape index: {}]
  %s3 = inlined_call_operand.vmem [shape: f32[32,32], index: 3, kind: input, shape index: {}]
  %s4 = inlined_call_operand.vmem [shape: f32[32,1], index: 4, kind: input, shape index: {}]
  %s5 = inlined_call_operand.vmem [shape: f32[32,1], index: 5, kind: input, shape index: {}]
  %s6 = inlined_call_operand.hbm [shape: f32[1,256], index: 6, kind: output, shape index: {}]
  %s7 = sld [smem:[#allocation0]]
  $region34: #{dcsnn_forward.1} parent=0
    _
  %s9 = ssub.s32 1, %s7
  %s10 = scalar_select 0, %s9, %s7
  $region1: #{dcsnn_forward.1} parent=0
    #allocation2 [shape = 'u8[1024]{0}', space=vmem, size = 0x400, scoped, tag = 'output window, operand 0, single buffered']
    #allocation3 [shape = 's32[1]{0}', space=sflag, size = 0x4, scoped, tag = 'scoped memory for dcsnn_forward.1']
    %11 = vsyncpa [#allocation3], 0
    // Predicated region
    $region2: #{dcsnn_forward.1} parent=1 // pred_check
      _
    $region3: #{dcsnn_forward.1} parent=1 // pred_check_branch
      %13 = sbr.rel (0) target = $region5
    $region4: #{dcsnn_forward.1} parent=1 // pred_region
      _
    $region5: #{dcsnn_forward.1} parent=1 // pred_fallthru
      _
    // Predicated region
    $region6: #{dcsnn_forward.1} parent=1 // pred_check
      _
    $region7: #{dcsnn_forward.1} parent=1 // pred_check_branch
      %15 = sbr.rel (0) target = $region9
    $region8: #{dcsnn_forward.1} parent=1 // pred_region
      _
    $region9: #{dcsnn_forward.1} parent=1 // pred_fallthru
      _
    // Predicated region
    $region10: #{dcsnn_forward.1} parent=1 // pred_check
      _
    $region11: #{dcsnn_forward.1} parent=1 // pred_check_branch
      %17 = sbr.rel (0) target = $region13
    $region12: #{dcsnn_forward.1} parent=1 // pred_region
      _
    $region13: #{dcsnn_forward.1} parent=1 // pred_fallthru
      _
    // Predicated region
    $region14: #{dcsnn_forward.1} parent=1 // pred_check
      _
    $region15: #{dcsnn_forward.1} parent=1 // pred_check_branch
      %19 = sbr.rel (0) target = $region17
    $region16: #{dcsnn_forward.1} parent=1 // pred_region
      _
    $region17: #{dcsnn_forward.1} parent=1 // pred_fallthru
      _
    // Predicated region
    $region18: #{dcsnn_forward.1} parent=1 // pred_check
      _
    $region19: #{dcsnn_forward.1} parent=1 // pred_check_branch
      %21 = sbr.rel (0) target = $region21
    $region20: #{dcsnn_forward.1} parent=1 // pred_region
      _
    $region21: #{dcsnn_forward.1} parent=1 // pred_fallthru
      _
    // Predicated region
    $region22: #{dcsnn_forward.1} parent=1 // pred_check
      _
    $region23: #{dcsnn_forward.1} parent=1 // pred_check_branch
      %23 = sbr.rel (0) target = $region25
    $region24: #{dcsnn_forward.1} parent=1 // pred_region
      _
    $region25: #{dcsnn_forward.1} parent=1 // pred_fallthru
      _
    %v24 = vld [vmem:[%s1] sm:$0xff]
    %v25 = vld [vmem:[%s1 + $0x8] sm:$0xff]
    %v26 = vld [vmem:[%s1 + $0x10] sm:$0xff]
    %v27 = vld [vmem:[%s1 + $0x18] sm:$0xff]
    %v28 = vld [vmem:[%s2] sm:$0xff]
    %v29 = vld [vmem:[%s2 + $0x8] sm:$0xff]
    %v30 = vld [vmem:[%s2 + $0x10] sm:$0xff]
    %v31 = vld [vmem:[%s2 + $0x18] sm:$0xff]
    %v32 = vld [vmem:[%s0] sm:$0xf]
    %34 = vset.pattern.permute.xlu0 0
    %35 = vperm.xlu0 %34, %v24
    %v36 = vpop.permute.xlu0 %35
    %39 = vset.pattern.permute.xlu0 0
    %40 = vperm.xlu0 %39, %v25
    %v41 = vpop.permute.xlu0 %40
    %44 = vset.pattern.permute.xlu0 0
    %45 = vperm.xlu0 %44, %v26
    %v46 = vpop.permute.xlu0 %45
    %49 = vset.pattern.permute.xlu0 0
    %50 = vperm.xlu0 %49, %v27
    %v51 = vpop.permute.xlu0 %50
    %v54 = vlaneseq
    %v55 = vshrl.u32 %v54, 7
    %v56 = vsub.s32 0, %v55
    %v57 = vrot.slane %v32, %v56
    %v58 = vlaneseq
    %v59 = vshrl.u32 %v58, 7
    %v60 = vsub.s32 2, %v59
    %v61 = vrot.slane %v32, %v60
    %v64 = vlaneseq
    %v65 = vshrl.u32 %v64, 7
    %v66 = vsub.s32 0, %v65
    %v67 = vrot.slane %v57, %v66
    %v68 = vlaneseq
    %v69 = vshrl.u32 %v68, 7
    %v70 = vsub.s32 0, %v69
    %v71 = vrot.slane %v61, %v70
    %v72 = vmul.f32 %v36, %v67
    %v73 = vmul.f32 %v36, %v71
    %v74 = vmul.f32 %v41, %v67
    %v75 = vmul.f32 %v41, %v71
    %v76 = vmul.f32 %v46, %v67
    %v77 = vmul.f32 %v46, %v71
    %v78 = vmul.f32 %v51, %v67
    %v79 = vmul.f32 %v51, %v71
    %81 = vset.pattern.permute.xlu0 0
    %82 = vperm.xlu0 %81, %v28
    %v83 = vpop.permute.xlu0 %82
    %86 = vset.pattern.permute.xlu0 0
    %87 = vperm.xlu0 %86, %v29
    %v88 = vpop.permute.xlu0 %87
    %91 = vset.pattern.permute.xlu0 0
    %92 = vperm.xlu0 %91, %v30
    %v93 = vpop.permute.xlu0 %92
    %96 = vset.pattern.permute.xlu0 0
    %97 = vperm.xlu0 %96, %v31
    %v98 = vpop.permute.xlu0 %97
    %v100 = vadd.f32 %v83, %v72
    %v101 = vadd.f32 %v83, %v73
    %v102 = vadd.f32 %v88, %v74
    %v103 = vadd.f32 %v88, %v75
    %v104 = vadd.f32 %v93, %v76
    %v105 = vadd.f32 %v93, %v77
    %v106 = vadd.f32 %v98, %v78
    %v107 = vadd.f32 %v98, %v79
    %108 = vset.pattern.permute.xlu0 1
    %109 = vperm.xlu0 %108, %v24
    %v110 = vpop.permute.xlu0 %109
    %112 = vset.pattern.permute.xlu0 1
    %113 = vperm.xlu0 %112, %v25
    %v114 = vpop.permute.xlu0 %113
    %116 = vset.pattern.permute.xlu0 1
    %117 = vperm.xlu0 %116, %v26
    %v118 = vpop.permute.xlu0 %117
    %120 = vset.pattern.permute.xlu0 1
    %121 = vperm.xlu0 %120, %v27
    %v122 = vpop.permute.xlu0 %121
    %v124 = vlaneseq
    %v125 = vshrl.u32 %v124, 7
    %v126 = vsub.s32 1, %v125
    %v127 = vrot.slane %v32, %v126
    %v128 = vlaneseq
    %v129 = vshrl.u32 %v128, 7
    %v130 = vsub.s32 3, %v129
    %v131 = vrot.slane %v32, %v130
    %v134 = vlaneseq
    %v135 = vshrl.u32 %v134, 7
    %v136 = vsub.s32 1, %v135
    %v137 = vrot.slane %v127, %v136
    %v138 = vlaneseq
    %v139 = vshrl.u32 %v138, 7
    %v140 = vsub.s32 1, %v139
    %v141 = vrot.slane %v131, %v140
    %v142 = vmul.f32 %v110, %v137
    %v143 = vmul.f32 %v110, %v141
    %v144 = vmul.f32 %v114, %v137
    %v145 = vmul.f32 %v114, %v141
    %v146 = vmul.f32 %v118, %v137
    %v147 = vmul.f32 %v118, %v141
    %v148 = vmul.f32 %v122, %v137
    %v149 = vmul.f32 %v122, %v141
    %v150 = vadd.f32 %v100, %v142
    %v151 = vadd.f32 %v101, %v143
    %v152 = vadd.f32 %v102, %v144
    %v153 = vadd.f32 %v103, %v145
    %v154 = vadd.f32 %v104, %v146
    %v155 = vadd.f32 %v105, %v147
    %v156 = vadd.f32 %v106, %v148
    %v157 = vadd.f32 %v107, %v149
    %v158 = vmul.f32 %v150, 0.5
    %v159 = vmul.f32 %v151, 0.5
    %v160 = vmul.f32 %v152, 0.5
    %v161 = vmul.f32 %v153, 0.5
    %v162 = vmul.f32 %v154, 0.5
    %v163 = vmul.f32 %v155, 0.5
    %v164 = vmul.f32 %v156, 0.5
    %v165 = vmul.f32 %v157, 0.5
    %v166 = vtanh.pop %v158
    %v167 = vtanh.pop %v159
    %v168 = vtanh.pop %v160
    %v169 = vtanh.pop %v161
    %v170 = vtanh.pop %v162
    %v171 = vtanh.pop %v163
    %v172 = vtanh.pop %v164
    %v173 = vtanh.pop %v165
    %v174 = vmul.f32 %v166, 0.5
    %v175 = vmul.f32 %v167, 0.5
    %v176 = vmul.f32 %v168, 0.5
    %v177 = vmul.f32 %v169, 0.5
    %v178 = vmul.f32 %v170, 0.5
    %v179 = vmul.f32 %v171, 0.5
    %v180 = vmul.f32 %v172, 0.5
    %v181 = vmul.f32 %v173, 0.5
    %v182 = vadd.f32 %v174, 0.5
    %v183 = vadd.f32 %v175, 0.5
    %v184 = vadd.f32 %v176, 0.5
    %v185 = vadd.f32 %v177, 0.5
    %v186 = vadd.f32 %v178, 0.5
    %v187 = vadd.f32 %v179, 0.5
    %v188 = vadd.f32 %v180, 0.5
    %v189 = vadd.f32 %v181, 0.5
    %v190 = vld [vmem:[%s3] sm:$0xff]
    %v191 = vld [vmem:[%s3 + $0x8] sm:$0xff]
    %v192 = vld [vmem:[%s3 + $0x10] sm:$0xff]
    %v193 = vld [vmem:[%s3 + $0x18] sm:$0xff]
    %v194 = vld [vmem:[%s4] sm:$0xff]
    %v195 = vld [vmem:[%s4 + $0x8] sm:$0xff]
    %v196 = vld [vmem:[%s4 + $0x10] sm:$0xff]
    %v197 = vld [vmem:[%s4 + $0x18] sm:$0xff]
    %199 = vset.pattern.permute.xlu0 0
    %200 = vperm.xlu0 %199, %v194
    %v201 = vpop.permute.xlu0 %200
    %204 = vset.pattern.permute.xlu0 0
    %205 = vperm.xlu0 %204, %v195
    %v206 = vpop.permute.xlu0 %205
    %209 = vset.pattern.permute.xlu0 0
    %210 = vperm.xlu0 %209, %v196
    %v211 = vpop.permute.xlu0 %210
    %214 = vset.pattern.permute.xlu0 0
    %215 = vperm.xlu0 %214, %v197
    %v216 = vpop.permute.xlu0 %215
    %vm218 = vcmask 261120
    %v220 = vsel %vm218, %v190, 0
    %v223 = vsel %vm218, %v191, 0
    %v226 = vsel %vm218, %v192, 0
    %v229 = vsel %vm218, %v193, 0
    %231 = vmatprep.subr.mxu0 0.0
    %232 = vmatpush1.msra.mxu0 0.0
    %233 = vmatprep.subr.mxu0 0.0
    %234 = vmatpush1.msra.mxu0 0.0
    %235 = vmatprep.subr.mxu0 0.0
    %236 = vmatpush1.msra.mxu0 0.0
    %237 = vmatprep.subr.mxu0 0.0
    %238 = vmatpush1.msra.mxu0 0.0
    %239 = vmatprep.subr.mxu0 0.0
    %240 = vmatpush1.msra.mxu0 0.0
    %241 = vmatprep.subr.mxu0 0.0
    %242 = vmatpush1.msra.mxu0 0.0
    %243 = vmatprep.subr.mxu0 0.0
    %244 = vmatpush1.msra.mxu0 0.0
    %245 = vmatprep.subr.mxu0 0.0
    %246 = vmatpush1.msra.mxu0 0.0
    %247 = vmatprep.subr.mxu0 0.0
    %248 = vmatpush1.msra.mxu0 0.0
    %249 = vmatprep.subr.mxu0 0.0
    %250 = vmatpush1.msra.mxu0 0.0
    %251 = vmatprep.subr.mxu0 0.0
    %252 = vmatpush1.msra.mxu0 0.0
    %253 = vmatprep.subr.mxu0 0.0
    %254 = vmatpush1.msra.mxu0 0.0
    %255 = vmatprep.subr.mxu0 %v189
    %256 = vmatpush1.msra.mxu0 %v188
    %257 = vmatprep.subr.mxu0 %v187
    %258 = vmatpush1.msra.mxu0 %v186
    %259 = vmatprep.subr.mxu0 %v185
    %260 = vmatpush1.msra.mxu0 %v184
    %261 = vmatprep.subr.mxu0 %v183
    %262 = vmatpush1.msra.mxu0 %v182
    %263 = vmatprep.subr.mxu0 0.0
    %264 = vmatpush2.msra.mxu0 0.0
    %265 = vmatprep.subr.mxu0 0.0
    %266 = vmatpush2.msra.mxu0 0.0
    %267 = vmatprep.subr.mxu0 0.0
    %268 = vmatpush2.msra.mxu0 0.0
    %269 = vmatprep.subr.mxu0 0.0
    %270 = vmatpush2.msra.mxu0 0.0
    %271 = vmatprep.subr.mxu0 0.0
    %272 = vmatpush2.msra.mxu0 0.0
    %273 = vmatprep.subr.mxu0 0.0
    %274 = vmatpush2.msra.mxu0 0.0
    %275 = vmatprep.subr.mxu0 0.0
    %276 = vmatpush2.msra.mxu0 0.0
    %277 = vmatprep.subr.mxu0 0.0
    %278 = vmatpush2.msra.mxu0 0.0
    %279 = vmatprep.subr.mxu0 0.0
    %280 = vmatpush2.msra.mxu0 0.0
    %281 = vmatprep.subr.mxu0 0.0
    %282 = vmatpush2.msra.mxu0 0.0
    %283 = vmatprep.subr.mxu0 0.0
    %284 = vmatpush2.msra.mxu0 0.0
    %285 = vmatprep.subr.mxu0 0.0
    %286 = vmatpush2.msra.mxu0 0.0
    %287 = vmatprep.subr.mxu0 0.0
    %288 = vmatpush2.msra.mxu0 0.0
    %289 = vmatprep.subr.mxu0 0.0
    %290 = vmatpush2.msra.mxu0 0.0
    %291 = vmatprep.subr.mxu0 0.0
    %292 = vmatpush2.msra.mxu0 0.0
    %293 = vmatprep.subr.mxu0 0.0
    %294 = vmatpush2.msra.mxu0 0.0
    %295 = vmatprep.mubr.f32.mxu0 0.0
    %296 = vmatmul.mubr.f32.gmra.mxu0 %v220
    %v297 = vpop.f32.mrf.mxu0
    %v298 = vadd.f32 %v201, %v297
    %v299 = vpop.f32.mrf.mxu0
    %v300 = vadd.f32 %v201, %v299
    %301 = vmatprep.mubr.f32.mxu0 0.0
    %302 = vmatmul.mubr.f32.gmra.mxu0 %v223
    %v303 = vpop.f32.mrf.mxu0
    %v304 = vadd.f32 %v206, %v303
    %v305 = vpop.f32.mrf.mxu0
    %v306 = vadd.f32 %v206, %v305
    %307 = vmatprep.mubr.f32.mxu0 0.0
    %308 = vmatmul.mubr.f32.gmra.mxu0 %v226
    %v309 = vpop.f32.mrf.mxu0
    %v310 = vadd.f32 %v211, %v309
    %v311 = vpop.f32.mrf.mxu0
    %v312 = vadd.f32 %v211, %v311
    %313 = vmatprep.mubr.f32.mxu0 0.0
    %314 = vmatmul.mubr.f32.gmra.mxu0 %v229
    %v315 = vpop.f32.mrf.mxu0
    %v316 = vadd.f32 %v216, %v315
    %v317 = vpop.f32.mrf.mxu0
    %v318 = vadd.f32 %v216, %v317
    %319 = vdwg.mxu0
    %v320 = vmul.f32 %v298, 0.5
    %v321 = vmul.f32 %v300, 0.5
    %v322 = vmul.f32 %v304, 0.5
    %v323 = vmul.f32 %v306, 0.5
    %v324 = vmul.f32 %v310, 0.5
    %v325 = vmul.f32 %v312, 0.5
    %v326 = vmul.f32 %v316, 0.5
    %v327 = vmul.f32 %v318, 0.5
    %v328 = vtanh.pop %v320
    %v329 = vtanh.pop %v321
    %v330 = vtanh.pop %v322
    %v331 = vtanh.pop %v323
    %v332 = vtanh.pop %v324
    %v333 = vtanh.pop %v325
    %v334 = vtanh.pop %v326
    %v335 = vtanh.pop %v327
    %v336 = vmul.f32 %v328, 0.5
    %v337 = vmul.f32 %v329, 0.5
    %v338 = vmul.f32 %v330, 0.5
    %v339 = vmul.f32 %v331, 0.5
    %v340 = vmul.f32 %v332, 0.5
    %v341 = vmul.f32 %v333, 0.5
    %v342 = vmul.f32 %v334, 0.5
    %v343 = vmul.f32 %v335, 0.5
    %v344 = vadd.f32 %v336, 0.5
    %v345 = vadd.f32 %v337, 0.5
    %v346 = vadd.f32 %v338, 0.5
    %v347 = vadd.f32 %v339, 0.5
    %v348 = vadd.f32 %v340, 0.5
    %v349 = vadd.f32 %v341, 0.5
    %v350 = vadd.f32 %v342, 0.5
    %v351 = vadd.f32 %v343, 0.5
    %v352 = vld [vmem:[%s5] sm:$0xff]
    %v353 = vld [vmem:[%s5 + $0x8] sm:$0xff]
    %v354 = vld [vmem:[%s5 + $0x10] sm:$0xff]
    %v355 = vld [vmem:[%s5 + $0x18] sm:$0xff]
    %357 = vset.pattern.permute.xlu0 0
    %358 = vperm.xlu0 %357, %v352
    %v359 = vpop.permute.xlu0 %358
    %362 = vset.pattern.permute.xlu0 0
    %363 = vperm.xlu0 %362, %v353
    %v364 = vpop.permute.xlu0 %363
    %367 = vset.pattern.permute.xlu0 0
    %368 = vperm.xlu0 %367, %v354
    %v369 = vpop.permute.xlu0 %368
    %372 = vset.pattern.permute.xlu0 0
    %373 = vperm.xlu0 %372, %v355
    %v374 = vpop.permute.xlu0 %373
    %v376 = vmul.f32 %v344, %v359
    %v377 = vmul.f32 %v345, %v359
    %v378 = vmul.f32 %v346, %v364
    %v379 = vmul.f32 %v347, %v364
    %v380 = vmul.f32 %v348, %v369
    %v381 = vmul.f32 %v349, %v369
    %v382 = vmul.f32 %v350, %v374
    %v383 = vmul.f32 %v351, %v374
    %v384 = vadd.f32 %v376, %v378
    %v385 = vadd.f32 %v384, %v380
    %v386 = vadd.f32 %v385, %v382
    %v387 = vrot.slane %v386, 4
    %v388 = vadd.f32 %v386, %v387
    %v389 = vrot.slane %v388, 2
    %v390 = vadd.f32 %v388, %v389
    %v391 = vrot.slane %v390, 1
    %v392 = vadd.f32 %v390, %v391
    %v393 = vadd.f32 %v377, %v379
    %v394 = vadd.f32 %v393, %v381
    %v395 = vadd.f32 %v394, %v383
    %v396 = vrot.slane %v395, 4
    %v397 = vadd.f32 %v395, %v396
    %v398 = vrot.slane %v397, 2
    %v399 = vadd.f32 %v397, %v398
    %v400 = vrot.slane %v399, 1
    %v401 = vadd.f32 %v399, %v400
    %v404 = vcombine.low %v392, %v401
    %v406 = vunpack.c.l.s4 1966171168
    %v407 = vunpack.c.0.s8 %v406
    %v408 = vlaneseq
    %v409 = vshrl.u32 %v408, 7
    %v410 = vsub.s32 %v407, %v409
    %v411 = vrot.slane %v404, %v410
    %v413 = vunpack.c.l.s4 1966171168
    %v414 = vunpack.c.0.s8 %v413
    %v415 = vlaneseq
    %v416 = vshrl.u32 %v415, 7
    %v417 = vsub.s32 %v414, %v416
    %v418 = vrot.slane %v411, %v417
    %v420 = vlaneseq
    %vm421 = vcmp.ge.s32.totalorder %v420, 0
    %vm422 = vcmp.lt.s32.totalorder %v420, 256
    %vm423 = vmand %vm421, %vm422
    %424 = vst.msk [vmem:[#allocation2] sm:$0x3] %vm423, %v418
    // Predicated region
    $region26: #{dcsnn_forward.1} parent=1 // pred_check
      _
    $region27: #{dcsnn_forward.1} parent=1 // pred_check_branch
      %426 = sbr.rel (0) target = $region29
    $region28: #{dcsnn_forward.1} parent=1 // pred_region
      %s428 = ssub.s32 32, 32
      %429 = vsyncadd [#allocation3], %s428
      %s431 = sshll.u32 [#allocation2], 4
      %s432 = int_to_ptr.vmem [resolvable:$true] %s431
      %434 = dma.vmem_to_hbm [thread:$0]  %s432, 32, %s6, [#allocation3]
    $region29: #{dcsnn_forward.1} parent=1 // pred_fallthru
      _
    // Predicated region
    $region30: #{dcsnn_forward.1} parent=1 // pred_check
      _
    $region31: #{dcsnn_forward.1} parent=1 // pred_check_branch
      %436 = sbr.rel (0) target = $region33
    $region32: #{dcsnn_forward.1} parent=1 // pred_region
      %437 = dma.done [#allocation3], 32
    $region33: #{dcsnn_forward.1} parent=1 // pred_fallthru
      _
    %438 = vsyncpa [#allocation3], 1

</llo_original>
